<compile_context>
chip_gen: v5e
topology: v5e:2x2
jax: 0.10.0
libtpu: 0.0.40
codegen_flags: <defaults>
</compile_context>

<pallas_src>
import functools

import jax
import jax.numpy as jnp
from jax.experimental import pallas as pl
from jax.experimental.pallas import tpu as pltpu


def _cdiv(a, b):
    return (a + b - 1) // b


def _round_up(x, m):
    return ((x + m - 1) // m) * m


def lappe_kernel(vec_ref, val_ref, x_ref,
                 wav_ref, wal_ref, w2_ref, msum_ref, ssum_ref,
                 w3_ref, w4p_ref, wxp_ref, b_ref,
                 out_ref, *, max_freqs, dim_pe, dim_emb):
    bf, f32 = jnp.bfloat16, jnp.float32
    F, dp = max_freqs, dim_pe

    vec = vec_ref[...]                                   # [TN, F] f32 EigVecs
    val = val_ref[...]                                   # [TN, F] f32 EigVals
    mask_v = jnp.isnan(vec)                              # empty_mask[:, :, 0]
    vz = jnp.where(mask_v, 0.0, vec).astype(bf)          # pos_enc[empty_mask] = 0
    lz = jnp.where(jnp.isnan(val), 0.0, val).astype(bf)

    # linear_A: per-frequency Linear(2 -> 2*dp) as two wide block-structured
    # matmuls against kron-built weight slabs ([F, F*2dp]).
    h1 = (jnp.dot(vz, wav_ref[...], preferred_element_type=f32)
          + jnp.dot(lz, wal_ref[...], preferred_element_type=f32)
          + b_ref[0:1, :F * 2 * dp])
    h1 = jnp.maximum(h1, 0.0)                            # [TN, F*2dp] f32

    # pe_encoder layer 2: block-diagonal Linear(2*dp -> dp) per frequency.
    h2 = (jnp.dot(h1.astype(bf), w2_ref[...], preferred_element_type=f32)
          + b_ref[1:2, :F * dp])
    h2 = jnp.maximum(h2, 0.0)                            # [TN, F*dp] f32

    # masked_fill(isnan(EigVecs)) broadcast over the dp lanes of each
    # frequency (mask-gate expansion matmul), then sum over frequencies via a
    # summation matrix (avoids lane reshapes of wide tensors).
    notmask = jnp.logical_not(mask_v).astype(bf)         # [TN, F]
    gate = jnp.dot(notmask, msum_ref[...], preferred_element_type=f32)   # [TN, F*dp]
    pe = jnp.dot((h2 * gate).astype(bf), ssum_ref[...],
                 preferred_element_type=f32)             # [TN, dp]

    # post_mlp: Linear(dp -> 2dp) -> ReLU -> Linear(2dp -> dp) -> ReLU.
    p1 = jnp.maximum(
        jnp.dot(pe.astype(bf), w3_ref[...], preferred_element_type=f32)
        + b_ref[2:3, :2 * dp], 0.0)
    # Final layer weights/bias are pre-placed into output columns
    # [d_hx:dim_emb] with zeros elsewhere, so ReLU keeps pad columns exactly 0.
    pe_full = jnp.maximum(
        jnp.dot(p1.astype(bf), w4p_ref[...], preferred_element_type=f32)
        + b_ref[4:5, :dim_emb], 0.0)                     # [TN, dim_emb]

    # expand_x: linear_x pre-placed into output columns [0:d_hx].
    hx_full = (jnp.dot(x_ref[...].astype(bf), wxp_ref[...],
                       preferred_element_type=f32)
               + b_ref[3:4, :dim_emb])                   # [TN, dim_emb]

    # Disjoint column supports -> the sum is exactly cat(hx, pe); one
    # full-width store, no overlapping masked column-slice stores.
    out_ref[...] = (hx_full + pe_full).astype(out_ref.dtype)


def lappe_forward(x, eig_vals, eig_vecs, params, *, dim_emb, dim_pe, tile_n=512):
    N, dim_in = x.shape
    F = eig_vecs.shape[1]
    d_hx = dim_emb - dim_pe
    assert d_hx >= 1
    bf = jnp.bfloat16

    wA, bA, w2, b2, w3, b3, w4, b4, wx, bx = params

    # --- Block-structured / placement weight slabs (built once, tiny) ---
    eyeF = jnp.eye(F, dtype=jnp.float32)
    WA_vec = jnp.kron(eyeF, wA[0:1, :]).astype(bf)           # [F, F*2dp]
    WA_val = jnp.kron(eyeF, wA[1:2, :]).astype(bf)           # [F, F*2dp]
    W2_bd = jnp.kron(eyeF, w2).astype(bf)                    # [F*2dp, F*dp]
    Msum = jnp.kron(eyeF, jnp.ones((1, dim_pe), jnp.float32)).astype(bf)   # [F, F*dp]
    Ssum = jnp.kron(jnp.ones((F, 1), jnp.float32),
                    jnp.eye(dim_pe, dtype=jnp.float32)).astype(bf)         # [F*dp, dp]
    w3_b = w3.astype(bf)                                     # [dp, 2dp]
    wx_place = jnp.zeros((dim_in, dim_emb), jnp.float32).at[:, :d_hx].set(wx).astype(bf)
    w4_place = jnp.zeros((2 * dim_pe, dim_emb), jnp.float32).at[:, d_hx:].set(w4).astype(bf)

    # --- All biases packed into one f32 slab (fewer DMA streams) ---
    bias_w = max(2 * dim_pe * F, dim_emb)
    b_slab = jnp.zeros((8, bias_w), jnp.float32)
    b_slab = b_slab.at[0, :F * 2 * dim_pe].set(jnp.tile(bA[0], F))   # linear_A bias
    b_slab = b_slab.at[1, :F * dim_pe].set(jnp.tile(b2[0], F))       # pe_encoder L2 bias
    b_slab = b_slab.at[2, :2 * dim_pe].set(b3[0])                    # post_mlp L1 bias
    b_slab = b_slab.at[3, :d_hx].set(bx[0])                          # linear_x bias (placed)
    b_slab = b_slab.at[4, d_hx:dim_emb].set(b4[0])                   # post_mlp L2 bias (placed)

    ev2 = eig_vals[..., 0]                                   # [N, F] f32

    # --- Tile: balanced blocks, >= 2 grid steps (v7x megacore), mult. of 16 ---
    tile_n = max(16, _round_up(tile_n, 16))
    n_blocks = max(2, _cdiv(N, tile_n))
    tile = min(tile_n, max(16, _round_up(_cdiv(N, n_blocks), 16)))
    grid = (_cdiv(N, tile),)

    row_map = lambda i: (i, 0)
    fix_map = lambda i: (0, 0)
    fixed = lambda a: pl.BlockSpec(a.shape, fix_map)

    kernel = functools.partial(lappe_kernel, max_freqs=F, dim_pe=dim_pe, dim_emb=dim_emb)

    return pl.pallas_call(
        kernel,
        out_shape=jax.ShapeDtypeStruct((N, dim_emb), jnp.bfloat16),
        grid_spec=pltpu.PrefetchScalarGridSpec(
            num_scalar_prefetch=0,
            grid=grid,
            in_specs=[
                pl.BlockSpec((tile, F), row_map),            # EigVecs (f32)
                pl.BlockSpec((tile, F), row_map),            # EigVals (f32, squeezed)
                pl.BlockSpec((tile, dim_in), row_map),       # x (f32)
                fixed(WA_vec), fixed(WA_val), fixed(W2_bd),
                fixed(Msum), fixed(Ssum),
                fixed(w3_b), fixed(w4_place), fixed(wx_place),
                fixed(b_slab),
            ],
            out_specs=pl.BlockSpec((tile, dim_emb), row_map)),
        compiler_params=pltpu.CompilerParams(
            dimension_semantics=("parallel",),
            vmem_limit_bytes=32 * 1024 * 1024),
    )(eig_vecs, ev2, x, WA_vec, WA_val, W2_bd, Msum, Ssum,
      w3_b, w4_place, wx_place, b_slab)


def init_linear(key, fan_in, fan_out):
    # PyTorch nn.Linear default init: U(-1/sqrt(fan_in), 1/sqrt(fan_in)).
    kw, kb = jax.random.split(key)
    bound = 1.0 / jnp.sqrt(fan_in)
    w = jax.random.uniform(kw, (fan_in, fan_out), jnp.float32, -bound, bound)
    b = jax.random.uniform(kb, (1, fan_out), jnp.float32, -bound, bound)
    return w, b


def reference_f32(x, eig_vals, eig_vecs, params):
    # Pure-JAX f32 replica of the PyTorch forward (eval mode).
    wA, bA, w2, b2, w3, b3, w4, b4, wx, bx = params
    hp = 'highest'
    pos_enc = jnp.concatenate([eig_vecs[:, :, None], eig_vals], axis=2)  # [N,F,2]
    empty_mask = jnp.isnan(pos_enc)
    pos_enc = jnp.where(empty_mask, 0.0, pos_enc)
    h = jnp.maximum(jnp.einsum('nfc,cd->nfd', pos_enc, wA, precision=hp) + bA[0], 0.0)
    h = jnp.maximum(jnp.einsum('nfd,de->nfe', h, w2, precision=hp) + b2[0], 0.0)
    h = jnp.where(empty_mask[:, :, 0:1], 0.0, h)
    pe = jnp.sum(h, axis=1)
    pe = jnp.maximum(jnp.dot(pe, w3, precision=hp) + b3[0], 0.0)
    pe = jnp.maximum(jnp.dot(pe, w4, precision=hp) + b4[0], 0.0)
    hx = jnp.dot(x, wx, precision=hp) + bx[0]
    return jnp.concatenate([hx, pe], axis=1)


def reference_bf16(x, eig_vals, eig_vecs, params):
    # Mirrors the kernel's bf16-operand / f32-accumulation numerics and the
    # bf16 output dtype.
    bf, f32 = jnp.bfloat16, jnp.float32
    wA, bA, w2, b2, w3, b3, w4, b4, wx, bx = params
    mv = jnp.isnan(eig_vecs)
    ml = jnp.isnan(eig_vals[:, :, 0])
    vz = jnp.where(mv, 0.0, eig_vecs).astype(bf)
    lz = jnp.where(ml, 0.0, eig_vals[:, :, 0]).astype(bf)
    pos = jnp.stack([vz, lz], axis=2)                       # [N,F,2]
    h = jnp.maximum(jnp.einsum('nfc,cd->nfd', pos, wA.astype(bf),
                               preferred_element_type=f32) + bA[0], 0.0)
    h = jnp.maximum(jnp.einsum('nfd,de->nfe', h.astype(bf), w2.astype(bf),
                               preferred_element_type=f32) + b2[0], 0.0)
    h = jnp.where(mv[:, :, None], 0.0, h)
    pe = jnp.sum(h.astype(bf).astype(f32), axis=1)
    pe = jnp.maximum(jnp.dot(pe.astype(bf), w3.astype(bf),
                             preferred_element_type=f32) + b3[0], 0.0)
    pe = jnp.maximum(jnp.dot(pe.astype(bf), w4.astype(bf),
                             preferred_element_type=f32) + b4[0], 0.0)
    hx = jnp.dot(x.astype(bf), wx.astype(bf), preferred_element_type=f32) + bx[0]
    return jnp.concatenate([hx, pe], axis=1).astype(bf)


if __name__ == "__main__":
    # Small shapes consistent with the module.
    N = 64            # number of nodes
    dim_in = 32       # input node feature dim
    max_freqs = 8     # F
    dim_pe = 16
    dim_emb = 48      # linear_x maps dim_in -> dim_emb - dim_pe = 32

    key = jax.random.PRNGKey(0)
    k_x, k_vec, k_val, k1, k2, k3, k4, k5 = jax.random.split(key, 8)

    x = jax.random.normal(k_x, (N, dim_in), jnp.float32)
    eig_vecs = jax.random.normal(k_vec, (N, max_freqs), jnp.float32)
    eig_vals = jax.random.normal(k_val, (N, max_freqs, 1), jnp.float32)

    # NaN padding on the last few frequencies for half the nodes, exercising
    # the isnan mask / masked_fill path.
    freq_idx = jnp.arange(max_freqs)[None, :]
    node_idx = jnp.arange(N)[:, None]
    pad = (node_idx % 2 == 0) & (freq_idx >= max_freqs - 3)
    eig_vecs = jnp.where(pad, jnp.nan, eig_vecs)
    eig_vals = jnp.where(pad[:, :, None], jnp.nan, eig_vals)

    # Parameters (DeepSet, n_layers=2, post_n_layers=2):
    wA, bA = init_linear(k1, 2, 2 * dim_pe)             # linear_A: 2 -> 2*dim_pe
    w2, b2 = init_linear(k2, 2 * dim_pe, dim_pe)        # pe_encoder Linear
    w3, b3 = init_linear(k3, dim_pe, 2 * dim_pe)        # post_mlp Linear 1
    w4, b4 = init_linear(k4, 2 * dim_pe, dim_pe)        # post_mlp Linear 2
    wx, bx = init_linear(k5, dim_in, dim_emb - dim_pe)  # linear_x
    params = (wA, bA, w2, b2, w3, b3, w4, b4, wx, bx)

    fwd = jax.jit(functools.partial(lappe_forward, dim_emb=dim_emb,
                                    dim_pe=dim_pe, tile_n=512))
    out = jax.block_until_ready(fwd(x, eig_vals, eig_vecs, params))
    assert out.shape == (N, dim_emb)
    assert out.dtype == jnp.bfloat16
    out_f = out.astype(jnp.float32)

    # Tight check against a reference that mirrors the kernel's bf16 numerics.
    ref_bf = reference_bf16(x, eig_vals, eig_vecs, params).astype(jnp.float32)
    assert jnp.allclose(out_f, ref_bf, atol=2e-2, rtol=2e-2), "mismatch vs. bf16 reference"

    # Looser sanity check against the pure-f32 PyTorch-equivalent forward
    # (bf16 operands + bf16 output trade precision for HBM/MXU throughput).
    ref_32 = reference_f32(x, eig_vals, eig_vecs, params)
    assert jnp.allclose(out_f, ref_32, atol=2.5e-1, rtol=6e-2), "mismatch vs. f32 reference"

    print("KERNEL_OK")
</pallas_src>

<mosaic_0001>
module attributes {stable_mosaic.version = 11 : i64} {
  func.func @lappe_kernel(%arg0: i32, %arg1: memref<32x8xf32, #tpu.memory_space<vmem>>, %arg2: memref<32x8xf32, #tpu.memory_space<vmem>>, %arg3: memref<32x32xf32, #tpu.memory_space<vmem>>, %arg4: memref<8x256xbf16, #tpu.memory_space<vmem>>, %arg5: memref<8x256xbf16, #tpu.memory_space<vmem>>, %arg6: memref<256x128xbf16, #tpu.memory_space<vmem>>, %arg7: memref<8x128xbf16, #tpu.memory_space<vmem>>, %arg8: memref<128x16xbf16, #tpu.memory_space<vmem>>, %arg9: memref<16x32xbf16, #tpu.memory_space<vmem>>, %arg10: memref<32x48xbf16, #tpu.memory_space<vmem>>, %arg11: memref<32x48xbf16, #tpu.memory_space<vmem>>, %arg12: memref<8x256xf32, #tpu.memory_space<vmem>>, %arg13: memref<32x48xbf16, #tpu.memory_space<vmem>>) attributes {dimension_semantics = [#tpu.dimension_semantics<parallel>], iteration_bounds = array<i64: 2>, scalar_prefetch = 0 : i64, scratch_operands = 0 : i64, tpu.core_type = #tpu.core_type<tc>, window_params = [{transform_indices = @transform_0, window_bounds = array<i64: 32, 8>}, {transform_indices = @transform_1, window_bounds = array<i64: 32, 8>}, {transform_indices = @transform_2, window_bounds = array<i64: 32, 32>}, {pipeline_mode = #tpu.pipeline_mode<synchronous>, transform_indices = @transform_3, window_bounds = array<i64: 8, 256>}, {pipeline_mode = #tpu.pipeline_mode<synchronous>, transform_indices = @transform_4, window_bounds = array<i64: 8, 256>}, {pipeline_mode = #tpu.pipeline_mode<synchronous>, transform_indices = @transform_5, window_bounds = array<i64: 256, 128>}, {pipeline_mode = #tpu.pipeline_mode<synchronous>, transform_indices = @transform_6, window_bounds = array<i64: 8, 128>}, {pipeline_mode = #tpu.pipeline_mode<synchronous>, transform_indices = @transform_7, window_bounds = array<i64: 128, 16>}, {pipeline_mode = #tpu.pipeline_mode<synchronous>, transform_indices = @transform_8, window_bounds = array<i64: 16, 32>}, {pipeline_mode = #tpu.pipeline_mode<synchronous>, transform_indices = @transform_9, window_bounds = array<i64: 32, 48>}, {pipeline_mode = #tpu.pipeline_mode<synchronous>, transform_indices = @transform_10, window_bounds = array<i64: 32, 48>}, {pipeline_mode = #tpu.pipeline_mode<synchronous>, transform_indices = @transform_11, window_bounds = array<i64: 8, 256>}, {transform_indices = @transform_12, window_bounds = array<i64: 32, 48>}]} {
    %c0 = arith.constant 0 : index
    %c0_0 = arith.constant 0 : index
    %0 = vector.load %arg1[%c0, %c0_0] : memref<32x8xf32, #tpu.memory_space<vmem>>, vector<32x8xf32>
    %c0_1 = arith.constant 0 : index
    %c0_2 = arith.constant 0 : index
    %1 = vector.load %arg2[%c0_1, %c0_2] : memref<32x8xf32, #tpu.memory_space<vmem>>, vector<32x8xf32>
    %2 = arith.cmpf one, %0, %0 : vector<32x8xf32>
    %cst = arith.constant 0.000000e+00 : f32
    %3 = vector.broadcast %cst : f32 to vector<32x8xf32>
    %4 = arith.select %2, %3, %0 : vector<32x8xi1>, vector<32x8xf32>
    %5 = arith.truncf %4 : vector<32x8xf32> to vector<32x8xbf16>
    %6 = arith.cmpf one, %1, %1 : vector<32x8xf32>
    %cst_3 = arith.constant 0.000000e+00 : f32
    %7 = vector.broadcast %cst_3 : f32 to vector<32x8xf32>
    %8 = arith.select %6, %7, %1 : vector<32x8xi1>, vector<32x8xf32>
    %9 = arith.truncf %8 : vector<32x8xf32> to vector<32x8xbf16>
    %c0_4 = arith.constant 0 : index
    %c0_5 = arith.constant 0 : index
    %10 = vector.load %arg4[%c0_4, %c0_5] : memref<8x256xbf16, #tpu.memory_space<vmem>>, vector<8x256xbf16>
    %cst_6 = arith.constant dense<0.000000e+00> : vector<32x256xf32>
    %11 = tpu.matmul %5, %10, %cst_6 {dimension_numbers = #tpu.dot_dimension_numbers<[1], [0], [0], [1], [0, 0, 1, 1], [], []>} : vector<32x8xbf16>, vector<8x256xbf16>, vector<32x256xf32> -> vector<32x256xf32>
    %c0_7 = arith.constant 0 : index
    %c0_8 = arith.constant 0 : index
    %12 = vector.load %arg5[%c0_7, %c0_8] : memref<8x256xbf16, #tpu.memory_space<vmem>>, vector<8x256xbf16>
    %cst_9 = arith.constant dense<0.000000e+00> : vector<32x256xf32>
    %13 = tpu.matmul %9, %12, %cst_9 {dimension_numbers = #tpu.dot_dimension_numbers<[1], [0], [0], [1], [0, 0, 1, 1], [], []>} : vector<32x8xbf16>, vector<8x256xbf16>, vector<32x256xf32> -> vector<32x256xf32>
    %14 = arith.addf %11, %13 : vector<32x256xf32>
    %c0_10 = arith.constant 0 : index
    %c0_11 = arith.constant 0 : index
    %15 = vector.load %arg12[%c0_10, %c0_11] : memref<8x256xf32, #tpu.memory_space<vmem>>, vector<1x256xf32>
    %16 = vector.broadcast %15 : vector<1x256xf32> to vector<32x256xf32>
    %17 = arith.addf %14, %16 : vector<32x256xf32>
    %cst_12 = arith.constant 0.000000e+00 : f32
    %18 = vector.broadcast %cst_12 : f32 to vector<32x256xf32>
    %19 = arith.maximumf %17, %18 : vector<32x256xf32>
    %20 = arith.truncf %19 : vector<32x256xf32> to vector<32x256xbf16>
    %c0_13 = arith.constant 0 : index
    %c0_14 = arith.constant 0 : index
    %21 = vector.load %arg6[%c0_13, %c0_14] : memref<256x128xbf16, #tpu.memory_space<vmem>>, vector<256x128xbf16>
    %cst_15 = arith.constant dense<0.000000e+00> : vector<32x128xf32>
    %22 = tpu.matmul %20, %21, %cst_15 {dimension_numbers = #tpu.dot_dimension_numbers<[1], [0], [0], [1], [0, 0, 1, 1], [], []>} : vector<32x256xbf16>, vector<256x128xbf16>, vector<32x128xf32> -> vector<32x128xf32>
    %c1 = arith.constant 1 : index
    %c0_16 = arith.constant 0 : index
    %23 = vector.load %arg12[%c1, %c0_16] : memref<8x256xf32, #tpu.memory_space<vmem>>, vector<1x128xf32>
    %24 = vector.broadcast %23 : vector<1x128xf32> to vector<32x128xf32>
    %25 = arith.addf %22, %24 : vector<32x128xf32>
    %cst_17 = arith.constant 0.000000e+00 : f32
    %26 = vector.broadcast %cst_17 : f32 to vector<32x128xf32>
    %27 = arith.maximumf %25, %26 : vector<32x128xf32>
    %cst_18 = arith.constant dense<true> : vector<32x8xi1>
    %28 = arith.xori %2, %cst_18 : vector<32x8xi1>
    %29 = arith.extui %28 : vector<32x8xi1> to vector<32x8xi32>
    %30 = arith.sitofp %29 : vector<32x8xi32> to vector<32x8xf32>
    %31 = arith.truncf %30 : vector<32x8xf32> to vector<32x8xbf16>
    %c0_19 = arith.constant 0 : index
    %c0_20 = arith.constant 0 : index
    %32 = vector.load %arg7[%c0_19, %c0_20] : memref<8x128xbf16, #tpu.memory_space<vmem>>, vector<8x128xbf16>
    %cst_21 = arith.constant dense<0.000000e+00> : vector<32x128xf32>
    %33 = tpu.matmul %31, %32, %cst_21 {dimension_numbers = #tpu.dot_dimension_numbers<[1], [0], [0], [1], [0, 0, 1, 1], [], []>} : vector<32x8xbf16>, vector<8x128xbf16>, vector<32x128xf32> -> vector<32x128xf32>
    %34 = arith.mulf %27, %33 : vector<32x128xf32>
    %35 = arith.truncf %34 : vector<32x128xf32> to vector<32x128xbf16>
    %c0_22 = arith.constant 0 : index
    %c0_23 = arith.constant 0 : index
    %36 = vector.load %arg8[%c0_22, %c0_23] : memref<128x16xbf16, #tpu.memory_space<vmem>>, vector<128x16xbf16>
    %cst_24 = arith.constant dense<0.000000e+00> : vector<32x16xf32>
    %37 = tpu.matmul %35, %36, %cst_24 {dimension_numbers = #tpu.dot_dimension_numbers<[1], [0], [0], [1], [0, 0, 1, 1], [], []>} : vector<32x128xbf16>, vector<128x16xbf16>, vector<32x16xf32> -> vector<32x16xf32>
    %38 = arith.truncf %37 : vector<32x16xf32> to vector<32x16xbf16>
    %c0_25 = arith.constant 0 : index
    %c0_26 = arith.constant 0 : index
    %39 = vector.load %arg9[%c0_25, %c0_26] : memref<16x32xbf16, #tpu.memory_space<vmem>>, vector<16x32xbf16>
    %cst_27 = arith.constant dense<0.000000e+00> : vector<32x32xf32>
    %40 = tpu.matmul %38, %39, %cst_27 {dimension_numbers = #tpu.dot_dimension_numbers<[1], [0], [0], [1], [0, 0, 1, 1], [], []>} : vector<32x16xbf16>, vector<16x32xbf16>, vector<32x32xf32> -> vector<32x32xf32>
    %c2 = arith.constant 2 : index
    %c0_28 = arith.constant 0 : index
    %41 = vector.load %arg12[%c2, %c0_28] : memref<8x256xf32, #tpu.memory_space<vmem>>, vector<1x32xf32>
    %42 = vector.broadcast %41 : vector<1x32xf32> to vector<32x32xf32>
    %43 = arith.addf %40, %42 : vector<32x32xf32>
    %cst_29 = arith.constant 0.000000e+00 : f32
    %44 = vector.broadcast %cst_29 : f32 to vector<32x32xf32>
    %45 = arith.maximumf %43, %44 : vector<32x32xf32>
    %46 = arith.truncf %45 : vector<32x32xf32> to vector<32x32xbf16>
    %c0_30 = arith.constant 0 : index
    %c0_31 = arith.constant 0 : index
    %47 = vector.load %arg10[%c0_30, %c0_31] : memref<32x48xbf16, #tpu.memory_space<vmem>>, vector<32x48xbf16>
    %cst_32 = arith.constant dense<0.000000e+00> : vector<32x48xf32>
    %48 = tpu.matmul %46, %47, %cst_32 {dimension_numbers = #tpu.dot_dimension_numbers<[1], [0], [0], [1], [0, 0, 1, 1], [], []>} : vector<32x32xbf16>, vector<32x48xbf16>, vector<32x48xf32> -> vector<32x48xf32>
    %c4 = arith.constant 4 : index
    %c0_33 = arith.constant 0 : index
    %49 = vector.load %arg12[%c4, %c0_33] : memref<8x256xf32, #tpu.memory_space<vmem>>, vector<1x48xf32>
    %50 = vector.broadcast %49 : vector<1x48xf32> to vector<32x48xf32>
    %51 = arith.addf %48, %50 : vector<32x48xf32>
    %cst_34 = arith.constant 0.000000e+00 : f32
    %52 = vector.broadcast %cst_34 : f32 to vector<32x48xf32>
    %53 = arith.maximumf %51, %52 : vector<32x48xf32>
    %c0_35 = arith.constant 0 : index
    %c0_36 = arith.constant 0 : index
    %54 = vector.load %arg3[%c0_35, %c0_36] : memref<32x32xf32, #tpu.memory_space<vmem>>, vector<32x32xf32>
    %55 = arith.truncf %54 : vector<32x32xf32> to vector<32x32xbf16>
    %c0_37 = arith.constant 0 : index
    %c0_38 = arith.constant 0 : index
    %56 = vector.load %arg11[%c0_37, %c0_38] : memref<32x48xbf16, #tpu.memory_space<vmem>>, vector<32x48xbf16>
    %cst_39 = arith.constant dense<0.000000e+00> : vector<32x48xf32>
    %57 = tpu.matmul %55, %56, %cst_39 {dimension_numbers = #tpu.dot_dimension_numbers<[1], [0], [0], [1], [0, 0, 1, 1], [], []>} : vector<32x32xbf16>, vector<32x48xbf16>, vector<32x48xf32> -> vector<32x48xf32>
    %c3 = arith.constant 3 : index
    %c0_40 = arith.constant 0 : index
    %58 = vector.load %arg12[%c3, %c0_40] : memref<8x256xf32, #tpu.memory_space<vmem>>, vector<1x48xf32>
    %59 = vector.broadcast %58 : vector<1x48xf32> to vector<32x48xf32>
    %60 = arith.addf %57, %59 : vector<32x48xf32>
    %61 = arith.addf %60, %53 : vector<32x48xf32>
    %62 = arith.truncf %61 : vector<32x48xf32> to vector<32x48xbf16>
    %c0_41 = arith.constant 0 : index
    %c0_42 = arith.constant 0 : index
    %63 = vector.load %arg13[%c0_41, %c0_42] : memref<32x48xbf16, #tpu.memory_space<vmem>>, vector<32x48xbf16>
    tpu.vector_store %arg13[%c0_41, %c0_42], %62 {strides = array<i32>} : memref<32x48xbf16, #tpu.memory_space<vmem>>, vector<32x48xbf16>,
    return
  }
  func.func @transform_0(%arg0: i32) -> (i32, i32) {
    %c0_i32 = arith.constant 0 : i32
    %c0_i32_0 = arith.constant 0 : i32
    return %arg0, %c0_i32 : i32, i32
  }
  func.func @transform_1(%arg0: i32) -> (i32, i32) {
    %c0_i32 = arith.constant 0 : i32
    %c0_i32_0 = arith.constant 0 : i32
    return %arg0, %c0_i32 : i32, i32
  }
  func.func @transform_2(%arg0: i32) -> (i32, i32) {
    %c0_i32 = arith.constant 0 : i32
    %c0_i32_0 = arith.constant 0 : i32
    return %arg0, %c0_i32 : i32, i32
  }
  func.func @transform_3(%arg0: i32) -> (i32, i32) {
    %c0_i32 = arith.constant 0 : i32
    %c0_i32_0 = arith.constant 0 : i32
    %c0_i32_1 = arith.constant 0 : i32
    return %c0_i32, %c0_i32_0 : i32, i32
  }
  func.func @transform_4(%arg0: i32) -> (i32, i32) {
    %c0_i32 = arith.constant 0 : i32
    %c0_i32_0 = arith.constant 0 : i32
    %c0_i32_1 = arith.constant 0 : i32
    return %c0_i32, %c0_i32_0 : i32, i32
  }
  func.func @transform_5(%arg0: i32) -> (i32, i32) {
    %c0_i32 = arith.constant 0 : i32
    %c0_i32_0 = arith.constant 0 : i32
    %c0_i32_1 = arith.constant 0 : i32
    return %c0_i32, %c0_i32_0 : i32, i32
  }
  func.func @transform_6(%arg0: i32) -> (i32, i32) {
    %c0_i32 = arith.constant 0 : i32
    %c0_i32_0 = arith.constant 0 : i32
    %c0_i32_1 = arith.constant 0 : i32
    return %c0_i32, %c0_i32_0 : i32, i32
  }
  func.func @transform_7(%arg0: i32) -> (i32, i32) {
    %c0_i32 = arith.constant 0 : i32
    %c0_i32_0 = arith.constant 0 : i32
    %c0_i32_1 = arith.constant 0 : i32
    return %c0_i32, %c0_i32_0 : i32, i32
  }
  func.func @transform_8(%arg0: i32) -> (i32, i32) {
    %c0_i32 = arith.constant 0 : i32
    %c0_i32_0 = arith.constant 0 : i32
    %c0_i32_1 = arith.constant 0 : i32
    return %c0_i32, %c0_i32_0 : i32, i32
  }
  func.func @transform_9(%arg0: i32) -> (i32, i32) {
    %c0_i32 = arith.constant 0 : i32
    %c0_i32_0 = arith.constant 0 : i32
    %c0_i32_1 = arith.constant 0 : i32
    return %c0_i32, %c0_i32_0 : i32, i32
  }
  func.func @transform_10(%arg0: i32) -> (i32, i32) {
    %c0_i32 = arith.constant 0 : i32
    %c0_i32_0 = arith.constant 0 : i32
    %c0_i32_1 = arith.constant 0 : i32
    return %c0_i32, %c0_i32_0 : i32, i32
  }
  func.func @transform_11(%arg0: i32) -> (i32, i32) {
    %c0_i32 = arith.constant 0 : i32
    %c0_i32_0 = arith.constant 0 : i32
    %c0_i32_1 = arith.constant 0 : i32
    return %c0_i32, %c0_i32_0 : i32, i32
  }
  func.func @transform_12(%arg0: i32) -> (i32, i32) {
    %c0_i32 = arith.constant 0 : i32
    %c0_i32_0 = arith.constant 0 : i32
    return %arg0, %c0_i32 : i32, i32
  }
}

</mosaic_0001>

<llo_original>
// kernel: tile.14
$region0: #{tile.14}
  #allocation0 [shape = 's32[1]{0}', space=sflag, size = 0x4, scoped, tag = 'scoped memory for tile.14']
  %s0 = inlined_call_operand.vmem [shape: f32[16], index: 0, kind: input, shape index: {}]
  %s1 = inlined_call_operand.vmem [shape: f32[8,16], index: 1, kind: output, shape index: {}]
  // Predicated region
  $region2: #{tile.14} parent=0 // pred_check
    _
  $region3: #{tile.14} parent=0 // pred_check_branch
    %3 = sbr.rel (0) target = $region5
  $region4: #{tile.14} parent=0 // pred_region
    _
  $region5: #{tile.14} parent=0 // pred_fallthru
    _
  %v4 = vld [vmem:[%s0] ss:$0 sm:$0xff]
  %5 = vst [vmem:[%s1] sm:$0xff] %v4

// kernel: lappe_forward.1
$region0: #{lappe_forward.1}
  #allocation0 [shape = 'u32[]', space=smem, size = 0x4, offset = 0x4, fixed_abs, tag = 'smem constant byte address 0x4 - core index']
  #allocation1 [shape = 'u32[72,128]{1,0:T(1,128)}', space=vmem, size = 0x9000, scoped, tag = 'internal scratch']
  %s0 = inlined_call_operand.vmem [shape: f32[64,8], index: 0, kind: input, shape index: {}]
  %s1 = inlined_call_operand.vmem [shape: f32[64,8], index: 1, kind: input, shape index: {}]
  %s2 = inlined_call_operand.vmem [shape: f32[64,32], index: 2, kind: input, shape index: {}]
  %s3 = inlined_call_operand.vmem [shape: bf16[8,256], index: 3, kind: input, shape index: {}]
  %s4 = inlined_call_operand.vmem [shape: bf16[8,256], index: 4, kind: input, shape index: {}]
  %s5 = inlined_call_operand.vmem [shape: bf16[256,128], index: 5, kind: input, shape index: {}]
  %s6 = inlined_call_operand.vmem [shape: bf16[8,128], index: 6, kind: input, shape index: {}]
  %s7 = inlined_call_operand.vmem [shape: bf16[128,16], index: 7, kind: input, shape index: {}]
  %s8 = inlined_call_operand.vmem [shape: bf16[16,32], index: 8, kind: input, shape index: {}]
  %s9 = inlined_call_operand.vmem [shape: bf16[32,48], index: 9, kind: input, shape index: {}]
  %s10 = inlined_call_operand.vmem [shape: bf16[32,48], index: 10, kind: input, shape index: {}]
  %s11 = inlined_call_operand.vmem [shape: f32[8,256], index: 11, kind: input, shape index: {}]
  %s12 = inlined_call_operand.vmem [shape: bf16[64,48], index: 12, kind: output, shape index: {}]
  %s13 = sld [smem:[#allocation0]]
  $region81: #{lappe_forward.1} parent=0
    _
  %s15 = ssub.s32 1, %s13
  %s16 = scalar_select 0, %s15, %s13
  loop: start=0, step=1, limit=4
  $region2: #{lappe_forward.1} parent=0 // loop_pre_header
    _
  $region3: #{lappe_forward.1} parent=0 // loop_header
    %s18 = sphi 0, %s22
    %p19 = scmp.ge.s32.totalorder %s18, 4
    %s28 = sphi 0, %s30
    %s31 = sphi 0, %s28
    %s32 = sphi 0, %s31
    %s48 = sphi 0, %s32
    %s54 = sphi 0, %s56
    %s57 = sphi 0, %s54
    %s58 = sphi 0, %s57
    %s74 = sphi 0, %s58
    %s80 = sphi 0, %s82
    %s83 = sphi 0, %s80
    %s84 = sphi 0, %s83
    %s100 = sphi 0, %s84
    %s104 = sphi 0, %s104
    %s106 = sphi 0, %s104
    %s107 = sphi 0, %s106
    %s121 = sphi 0, %s107
    %s125 = sphi 0, %s125
    %s127 = sphi 0, %s125
    %s128 = sphi 0, %s127
    %s142 = sphi 0, %s128
    %s146 = sphi 0, %s146
    %s148 = sphi 0, %s146
    %s149 = sphi 0, %s148
    %s163 = sphi 0, %s149
    %s167 = sphi 0, %s167
    %s169 = sphi 0, %s167
    %s170 = sphi 0, %s169
    %s184 = sphi 0, %s170
    %s188 = sphi 0, %s188
    %s190 = sphi 0, %s188
    %s191 = sphi 0, %s190
    %s205 = sphi 0, %s191
    %s209 = sphi 0, %s209
    %s211 = sphi 0, %s209
    %s212 = sphi 0, %s211
    %s226 = sphi 0, %s212
    %s230 = sphi 0, %s230
    %s232 = sphi 0, %s230
    %s233 = sphi 0, %s232
    %s247 = sphi 0, %s233
    %s251 = sphi 0, %s251
    %s253 = sphi 0, %s251
    %s254 = sphi 0, %s253
    %s268 = sphi 0, %s254
    %s272 = sphi 0, %s272
    %s274 = sphi 0, %s272
    %s275 = sphi 0, %s274
    %s289 = sphi 0, %s275
    %s295 = sphi 0, %s297
    %s298 = sphi 0, %s295
    %s299 = sphi 0, %s298
    %s315 = sphi 0, %s299
  $region4: #{lappe_forward.1} parent=0 // loop_header_branch
    %21 = sbr.rel (%p19) target = $region8
  $region5: #{lappe_forward.1} parent=0 // loop_body
    %s23 = ssub.s32 %s18, 1
    %s24 = ssub.s32 %s18, 2
    %s25 = sadd.s32 %s18, 1
    %s26 = ssub.s32 %s18, %s25
    %p27 = scmp.eq.s32.totalorder %s26, 0
    %s29 = sadd.s32 %s28, 1
    %s30 = scalar_select %p27, %s28, %s29
    %p33 = pneg %p27
    %p34 = scmp.eq.s32.totalorder %s18, 1
    %p35 = por %p33, %p34
    %p36 = scmp.ne.s32.totalorder %s28, %s31
    %p37 = scmp.eq.s32.totalorder %s18, 0
    %p38 = por %p36, %p37
    %p39 = scmp.ne.s32.totalorder %s28, %s31
    %p40 = scmp.eq.s32.totalorder %s23, 1
    %p41 = por %p39, %p40
    %p42 = scmp.ne.s32.totalorder %s31, %s32
    %p43 = scmp.eq.s32.totalorder %s23, 0
    %p44 = por %p42, %p43
    %p45 = scmp.ne.s32.totalorder %s31, %s32
    %p46 = scmp.eq.s32.totalorder %s24, 1
    %p47 = por %p45, %p46
    %p49 = scmp.ne.s32.totalorder %s32, %s48
    %p50 = scmp.eq.s32.totalorder %s24, 0
    %p51 = por %p49, %p50
    %s52 = ssub.s32 %s18, %s25
    %p53 = scmp.eq.s32.totalorder %s52, 0
    %s55 = sadd.s32 %s54, 1
    %s56 = scalar_select %p53, %s54, %s55
    %p59 = pneg %p53
    %p60 = scmp.eq.s32.totalorder %s18, 1
    %p61 = por %p59, %p60
    %p62 = scmp.ne.s32.totalorder %s54, %s57
    %p63 = scmp.eq.s32.totalorder %s18, 0
    %p64 = por %p62, %p63
    %p65 = scmp.ne.s32.totalorder %s54, %s57
    %p66 = scmp.eq.s32.totalorder %s23, 1
    %p67 = por %p65, %p66
    %p68 = scmp.ne.s32.totalorder %s57, %s58
    %p69 = scmp.eq.s32.totalorder %s23, 0
    %p70 = por %p68, %p69
    %p71 = scmp.ne.s32.totalorder %s57, %s58
    %p72 = scmp.eq.s32.totalorder %s24, 1
    %p73 = por %p71, %p72
    %p75 = scmp.ne.s32.totalorder %s58, %s74
    %p76 = scmp.eq.s32.totalorder %s24, 0
    %p77 = por %p75, %p76
    %s78 = ssub.s32 %s18, %s25
    %p79 = scmp.eq.s32.totalorder %s78, 0
    %s81 = sadd.s32 %s80, 1
    %s82 = scalar_select %p79, %s80, %s81
    %p85 = pneg %p79
    %p86 = scmp.eq.s32.totalorder %s18, 1
    %p87 = por %p85, %p86
    %p88 = scmp.ne.s32.totalorder %s80, %s83
    %p89 = scmp.eq.s32.totalorder %s18, 0
    %p90 = por %p88, %p89
    %p91 = scmp.ne.s32.totalorder %s80, %s83
    %p92 = scmp.eq.s32.totalorder %s23, 1
    %p93 = por %p91, %p92
    %p94 = scmp.ne.s32.totalorder %s83, %s84
    %p95 = scmp.eq.s32.totalorder %s23, 0
    %p96 = por %p94, %p95
    %p97 = scmp.ne.s32.totalorder %s83, %s84
    %p98 = scmp.eq.s32.totalorder %s24, 1
    %p99 = por %p97, %p98
    %p101 = scmp.ne.s32.totalorder %s84, %s100
    %p102 = scmp.eq.s32.totalorder %s24, 0
    %p103 = por %p101, %p102
    %s105 = sadd.s32 %s104, 1
    %p108 = scmp.eq.s32.totalorder %s18, 1
    %p109 = scmp.ne.s32.totalorder %s104, %s106
    %p110 = scmp.eq.s32.totalorder %s18, 0
    %p111 = por %p109, %p110
    %p112 = scmp.ne.s32.totalorder %s104, %s106
    %p113 = scmp.eq.s32.totalorder %s23, 1
    %p114 = por %p112, %p113
    %p115 = scmp.ne.s32.totalorder %s106, %s107
    %p116 = scmp.eq.s32.totalorder %s23, 0
    %p117 = por %p115, %p116
    %p118 = scmp.ne.s32.totalorder %s106, %s107
    %p119 = scmp.eq.s32.totalorder %s24, 1
    %p120 = por %p118, %p119
    %p122 = scmp.ne.s32.totalorder %s107, %s121
    %p123 = scmp.eq.s32.totalorder %s24, 0
    %p124 = por %p122, %p123
    %s126 = sadd.s32 %s125, 1
    %p129 = scmp.eq.s32.totalorder %s18, 1
    %p130 = scmp.ne.s32.totalorder %s125, %s127
    %p131 = scmp.eq.s32.totalorder %s18, 0
    %p132 = por %p130, %p131
    %p133 = scmp.ne.s32.totalorder %s125, %s127
    %p134 = scmp.eq.s32.totalorder %s23, 1
    %p135 = por %p133, %p134
    %p136 = scmp.ne.s32.totalorder %s127, %s128
    %p137 = scmp.eq.s32.totalorder %s23, 0
    %p138 = por %p136, %p137
    %p139 = scmp.ne.s32.totalorder %s127, %s128
    %p140 = scmp.eq.s32.totalorder %s24, 1
    %p141 = por %p139, %p140
    %p143 = scmp.ne.s32.totalorder %s128, %s142
    %p144 = scmp.eq.s32.totalorder %s24, 0
    %p145 = por %p143, %p144
    %s147 = sadd.s32 %s146, 1
    %p150 = scmp.eq.s32.totalorder %s18, 1
    %p151 = scmp.ne.s32.totalorder %s146, %s148
    %p152 = scmp.eq.s32.totalorder %s18, 0
    %p153 = por %p151, %p152
    %p154 = scmp.ne.s32.totalorder %s146, %s148
    %p155 = scmp.eq.s32.totalorder %s23, 1
    %p156 = por %p154, %p155
    %p157 = scmp.ne.s32.totalorder %s148, %s149
    %p158 = scmp.eq.s32.totalorder %s23, 0
    %p159 = por %p157, %p158
    %p160 = scmp.ne.s32.totalorder %s148, %s149
    %p161 = scmp.eq.s32.totalorder %s24, 1
    %p162 = por %p160, %p161
    %p164 = scmp.ne.s32.totalorder %s149, %s163
    %p165 = scmp.eq.s32.totalorder %s24, 0
    %p166 = por %p164, %p165
    %s168 = sadd.s32 %s167, 1
    %p171 = scmp.eq.s32.totalorder %s18, 1
    %p172 = scmp.ne.s32.totalorder %s167, %s169
    %p173 = scmp.eq.s32.totalorder %s18, 0
    %p174 = por %p172, %p173
    %p175 = scmp.ne.s32.totalorder %s167, %s169
    %p176 = scmp.eq.s32.totalorder %s23, 1
    %p177 = por %p175, %p176
    %p178 = scmp.ne.s32.totalorder %s169, %s170
    %p179 = scmp.eq.s32.totalorder %s23, 0
    %p180 = por %p178, %p179
    %p181 = scmp.ne.s32.totalorder %s169, %s170
    %p182 = scmp.eq.s32.totalorder %s24, 1
    %p183 = por %p181, %p182
    %p185 = scmp.ne.s32.totalorder %s170, %s184
    %p186 = scmp.eq.s32.totalorder %s24, 0
    %p187 = por %p185, %p186
    %s189 = sadd.s32 %s188, 1
    %p192 = scmp.eq.s32.totalorder %s18, 1
    %p193 = scmp.ne.s32.totalorder %s188, %s190
    %p194 = scmp.eq.s32.totalorder %s18, 0
    %p195 = por %p193, %p194
    %p196 = scmp.ne.s32.totalorder %s188, %s190
    %p197 = scmp.eq.s32.totalorder %s23, 1
    %p198 = por %p196, %p197
    %p199 = scmp.ne.s32.totalorder %s190, %s191
    %p200 = scmp.eq.s32.totalorder %s23, 0
    %p201 = por %p199, %p200
    %p202 = scmp.ne.s32.totalorder %s190, %s191
    %p203 = scmp.eq.s32.totalorder %s24, 1
    %p204 = por %p202, %p203
    %p206 = scmp.ne.s32.totalorder %s191, %s205
    %p207 = scmp.eq.s32.totalorder %s24, 0
    %p208 = por %p206, %p207
    %s210 = sadd.s32 %s209, 1
    %p213 = scmp.eq.s32.totalorder %s18, 1
    %p214 = scmp.ne.s32.totalorder %s209, %s211
    %p215 = scmp.eq.s32.totalorder %s18, 0
    %p216 = por %p214, %p215
    %p217 = scmp.ne.s32.totalorder %s209, %s211
    %p218 = scmp.eq.s32.totalorder %s23, 1
    %p219 = por %p217, %p218
    %p220 = scmp.ne.s32.totalorder %s211, %s212
    %p221 = scmp.eq.s32.totalorder %s23, 0
    %p222 = por %p220, %p221
    %p223 = scmp.ne.s32.totalorder %s211, %s212
    %p224 = scmp.eq.s32.totalorder %s24, 1
    %p225 = por %p223, %p224
    %p227 = scmp.ne.s32.totalorder %s212, %s226
    %p228 = scmp.eq.s32.totalorder %s24, 0
    %p229 = por %p227, %p228
    %s231 = sadd.s32 %s230, 1
    %p234 = scmp.eq.s32.totalorder %s18, 1
    %p235 = scmp.ne.s32.totalorder %s230, %s232
    %p236 = scmp.eq.s32.totalorder %s18, 0
    %p237 = por %p235, %p236
    %p238 = scmp.ne.s32.totalorder %s230, %s232
    %p239 = scmp.eq.s32.totalorder %s23, 1
    %p240 = por %p238, %p239
    %p241 = scmp.ne.s32.totalorder %s232, %s233
    %p242 = scmp.eq.s32.totalorder %s23, 0
    %p243 = por %p241, %p242
    %p244 = scmp.ne.s32.totalorder %s232, %s233
    %p245 = scmp.eq.s32.totalorder %s24, 1
    %p246 = por %p244, %p245
    %p248 = scmp.ne.s32.totalorder %s233, %s247
    %p249 = scmp.eq.s32.totalorder %s24, 0
    %p250 = por %p248, %p249
    %s252 = sadd.s32 %s251, 1
    %p255 = scmp.eq.s32.totalorder %s18, 1
    %p256 = scmp.ne.s32.totalorder %s251, %s253
    %p257 = scmp.eq.s32.totalorder %s18, 0
    %p258 = por %p256, %p257
    %p259 = scmp.ne.s32.totalorder %s251, %s253
    %p260 = scmp.eq.s32.totalorder %s23, 1
    %p261 = por %p259, %p260
    %p262 = scmp.ne.s32.totalorder %s253, %s254
    %p263 = scmp.eq.s32.totalorder %s23, 0
    %p264 = por %p262, %p263
    %p265 = scmp.ne.s32.totalorder %s253, %s254
    %p266 = scmp.eq.s32.totalorder %s24, 1
    %p267 = por %p265, %p266
    %p269 = scmp.ne.s32.totalorder %s254, %s268
    %p270 = scmp.eq.s32.totalorder %s24, 0
    %p271 = por %p269, %p270
    %s273 = sadd.s32 %s272, 1
    %p276 = scmp.eq.s32.totalorder %s18, 1
    %p277 = scmp.ne.s32.totalorder %s272, %s274
    %p278 = scmp.eq.s32.totalorder %s18, 0
    %p279 = por %p277, %p278
    %p280 = scmp.ne.s32.totalorder %s272, %s274
    %p281 = scmp.eq.s32.totalorder %s23, 1
    %p282 = por %p280, %p281
    %p283 = scmp.ne.s32.totalorder %s274, %s275
    %p284 = scmp.eq.s32.totalorder %s23, 0
    %p285 = por %p283, %p284
    %p286 = scmp.ne.s32.totalorder %s274, %s275
    %p287 = scmp.eq.s32.totalorder %s24, 1
    %p288 = por %p286, %p287
    %p290 = scmp.ne.s32.totalorder %s275, %s289
    %p291 = scmp.eq.s32.totalorder %s24, 0
    %p292 = por %p290, %p291
    %s293 = ssub.s32 %s18, %s25
    %p294 = scmp.eq.s32.totalorder %s293, 0
    %s296 = sadd.s32 %s295, 1
    %s297 = scalar_select %p294, %s295, %s296
    %p300 = pneg %p294
    %p301 = scmp.eq.s32.totalorder %s18, 1
    %p302 = por %p300, %p301
    %p303 = scmp.ne.s32.totalorder %s295, %s298
    %p304 = scmp.eq.s32.totalorder %s18, 0
    %p305 = por %p303, %p304
    %p306 = scmp.ne.s32.totalorder %s295, %s298
    %p307 = scmp.eq.s32.totalorder %s23, 1
    %p308 = por %p306, %p307
    %p309 = scmp.ne.s32.totalorder %s298, %s299
    %p310 = scmp.eq.s32.totalorder %s23, 0
    %p311 = por %p309, %p310
    %p312 = scmp.ne.s32.totalorder %s298, %s299
    %p313 = scmp.eq.s32.totalorder %s24, 1
    %p314 = por %p312, %p313
    %p316 = scmp.ne.s32.totalorder %s299, %s315
    %p317 = scmp.eq.s32.totalorder %s24, 0
    %p318 = por %p316, %p317
    %p319 = scmp.le.s32.totalorder 1, %s18
    %p320 = scmp.lt.s32.totalorder %s18, 3
    %p321 = pnand %p319, %p320
    %p322 = pneg %p321
    // Predicated region
    $region9: #{lappe_forward.1} parent=5 // pred_check
      _
    $region10: #{lappe_forward.1} parent=5 // pred_check_branch
      %324 = sbr.rel (%p321) target = $region12
    $region11: #{lappe_forward.1} parent=5 // pred_region
      %s325 = ssub.s32 %s18, 1
      // Predicated region
      $region13: #{lappe_forward.1} parent=11 // pred_check
        %p326 = pneg %p117
      $region14: #{lappe_forward.1} parent=11 // pred_check_branch
        %328 = sbr.rel (%p326) target = $region16
      $region15: #{lappe_forward.1} parent=11 // pred_region
        _
      $region16: #{lappe_forward.1} parent=11 // pred_fallthru
        _
      // Predicated region
      $region17: #{lappe_forward.1} parent=11 // pred_check
        %p329 = pneg %p138
      $region18: #{lappe_forward.1} parent=11 // pred_check_branch
        %331 = sbr.rel (%p329) target = $region20
      $region19: #{lappe_forward.1} parent=11 // pred_region
        _
      $region20: #{lappe_forward.1} parent=11 // pred_fallthru
        _
      // Predicated region
      $region21: #{lappe_forward.1} parent=11 // pred_check
        %p332 = pneg %p159
      $region22: #{lappe_forward.1} parent=11 // pred_check_branch
        %334 = sbr.rel (%p332) target = $region24
      $region23: #{lappe_forward.1} parent=11 // pred_region
        _
      $region24: #{lappe_forward.1} parent=11 // pred_fallthru
        _
      // Predicated region
      $region25: #{lappe_forward.1} parent=11 // pred_check
        %p335 = pneg %p180
      $region26: #{lappe_forward.1} parent=11 // pred_check_branch
        %337 = sbr.rel (%p335) target = $region28
      $region27: #{lappe_forward.1} parent=11 // pred_region
        _
      $region28: #{lappe_forward.1} parent=11 // pred_fallthru
        _
      // Predicated region
      $region29: #{lappe_forward.1} parent=11 // pred_check
        %p338 = pneg %p201
      $region30: #{lappe_forward.1} parent=11 // pred_check_branch
        %340 = sbr.rel (%p338) target = $region32
      $region31: #{lappe_forward.1} parent=11 // pred_region
        _
      $region32: #{lappe_forward.1} parent=11 // pred_fallthru
        _
      // Predicated region
      $region33: #{lappe_forward.1} parent=11 // pred_check
        %p341 = pneg %p222
      $region34: #{lappe_forward.1} parent=11 // pred_check_branch
        %343 = sbr.rel (%p341) target = $region36
      $region35: #{lappe_forward.1} parent=11 // pred_region
        _
      $region36: #{lappe_forward.1} parent=11 // pred_fallthru
        _
      // Predicated region
      $region37: #{lappe_forward.1} parent=11 // pred_check
        %p344 = pneg %p243
      $region38: #{lappe_forward.1} parent=11 // pred_check_branch
        %346 = sbr.rel (%p344) target = $region40
      $region39: #{lappe_forward.1} parent=11 // pred_region
        _
      $region40: #{lappe_forward.1} parent=11 // pred_fallthru
        _
      // Predicated region
      $region41: #{lappe_forward.1} parent=11 // pred_check
        %p347 = pneg %p264
      $region42: #{lappe_forward.1} parent=11 // pred_check_branch
        %349 = sbr.rel (%p347) target = $region44
      $region43: #{lappe_forward.1} parent=11 // pred_region
        _
      $region44: #{lappe_forward.1} parent=11 // pred_fallthru
        _
      // Predicated region
      $region45: #{lappe_forward.1} parent=11 // pred_check
        %p350 = pneg %p285
      $region46: #{lappe_forward.1} parent=11 // pred_check_branch
        %352 = sbr.rel (%p350) target = $region48
      $region47: #{lappe_forward.1} parent=11 // pred_region
        _
      $region48: #{lappe_forward.1} parent=11 // pred_fallthru
        _
    $region12: #{lappe_forward.1} parent=5 // pred_fallthru
      _
    %p353 = scmp.lt.s32.totalorder %s18, 2
    // Predicated region
    $region49: #{lappe_forward.1} parent=5 // pred_check
      %p354 = pneg %p353
    $region50: #{lappe_forward.1} parent=5 // pred_check_branch
      %356 = sbr.rel (%p354) target = $region52
    $region51: #{lappe_forward.1} parent=5 // pred_region
      // Predicated region
      $region53: #{lappe_forward.1} parent=51 // pred_check
        %p357 = pneg %p38
      $region54: #{lappe_forward.1} parent=51 // pred_check_branch
        %359 = sbr.rel (%p357) target = $region56
      $region55: #{lappe_forward.1} parent=51 // pred_region
        %s360 = smul.u32 4, %s18
        %p361 = scmp.lt.s32.totalorder %s360, 7
        %s362 = scalar_select %p361, %s360, 7
        %s363 = smul.addr %s362, 8
        %s364 = scalar_lea.vmem %s0, %s363
        %s365 = smul.u32 4, %s18
      $region56: #{lappe_forward.1} parent=51 // pred_fallthru
        _
      // Predicated region
      $region57: #{lappe_forward.1} parent=51 // pred_check
        %p366 = pneg %p64
      $region58: #{lappe_forward.1} parent=51 // pred_check_branch
        %368 = sbr.rel (%p366) target = $region60
      $region59: #{lappe_forward.1} parent=51 // pred_region
        %s369 = smul.u32 4, %s18
        %p370 = scmp.lt.s32.totalorder %s369, 7
        %s371 = scalar_select %p370, %s369, 7
        %s372 = smul.addr %s371, 8
        %s373 = scalar_lea.vmem %s1, %s372
        %s374 = smul.u32 4, %s18
      $region60: #{lappe_forward.1} parent=51 // pred_fallthru
        _
      // Predicated region
      $region61: #{lappe_forward.1} parent=51 // pred_check
        %p375 = pneg %p90
      $region62: #{lappe_forward.1} parent=51 // pred_check_branch
        %377 = sbr.rel (%p375) target = $region64
      $region63: #{lappe_forward.1} parent=51 // pred_region
        %s378 = smul.u32 4, %s18
        %p379 = scmp.lt.s32.totalorder %s378, 7
        %s380 = scalar_select %p379, %s378, 7
        %s381 = smul.addr %s380, 8
        %s382 = scalar_lea.vmem %s2, %s381
        %s383 = smul.u32 4, %s18
      $region64: #{lappe_forward.1} parent=51 // pred_fallthru
        _
    $region52: #{lappe_forward.1} parent=5 // pred_fallthru
      _
    %p384 = scmp.le.s32.totalorder 1, %s18
    %p385 = scmp.lt.s32.totalorder %s18, 3
    %p386 = pnand %p384, %p385
    %p387 = pneg %p386
    // Predicated region
    $region65: #{lappe_forward.1} parent=5 // pred_check
      _
    $region66: #{lappe_forward.1} parent=5 // pred_check_branch
      %389 = sbr.rel (%p386) target = $region68
    $region67: #{lappe_forward.1} parent=5 // pred_region
      %s390 = ssub.s32 %s18, 1
      %s391 = smul.u32 4, %s23
      %p392 = scmp.lt.s32.totalorder %s391, 7
      %s393 = scalar_select %p392, %s391, 7
      %s394 = smul.addr %s393, 8
      %s395 = scalar_lea.vmem %s0, %s394
      %p396 = pneg %p44
      %p397 = pneg %p41
      %s398 = smul.u32 4, %s23
      %p399 = scmp.lt.s32.totalorder %s398, 7
      %s400 = scalar_select %p399, %s398, 7
      %s401 = smul.addr %s400, 8
      %s402 = scalar_lea.vmem %s1, %s401
      %p403 = pneg %p70
      %p404 = pneg %p67
      %s405 = smul.u32 4, %s23
      %p406 = scmp.lt.s32.totalorder %s405, 7
      %s407 = scalar_select %p406, %s405, 7
      %s408 = smul.addr %s407, 8
      %s409 = scalar_lea.vmem %s2, %s408
      %p410 = pneg %p96
      %p411 = pneg %p93
      %p412 = pneg %p117
      %p413 = pneg %p114
      %p414 = pneg %p138
      %p415 = pneg %p135
      %p416 = pneg %p159
      %p417 = pneg %p156
      %p418 = pneg %p180
      %p419 = pneg %p177
      %p420 = pneg %p201
      %p421 = pneg %p198
      %p422 = pneg %p222
      %p423 = pneg %p219
      %p424 = pneg %p243
      %p425 = pneg %p240
      %p426 = pneg %p264
      %p427 = pneg %p261
      %p428 = pneg %p285
      %p429 = pneg %p282
      %p430 = pneg %p311
      %p431 = pneg %p308
      %s432 = smul.u32 4, %s23
      %p433 = scmp.lt.s32.totalorder %s432, 7
      %s434 = scalar_select %p433, %s432, 7
      %s435 = smul.addr %s434, 4
      %s436 = scalar_lea.vmem %s12, %s435
      %s437 = smul.u32 4, %s23
      %p438 = scmp.lt.s32.totalorder %s437, 7
      %s439 = scalar_select %p438, %s437, 7
      %s440 = smul.addr %s439, 8
      %s441 = scalar_lea.vmem %s0, %s440
      %s442 = smul.u32 4, %s23
      %s443 = smul.u32 4, %s23
      %p444 = scmp.lt.s32.totalorder %s443, 7
      %s445 = scalar_select %p444, %s443, 7
      %s446 = smul.addr %s445, 8
      %s447 = scalar_lea.vmem %s1, %s446
      %s448 = smul.u32 4, %s23
      %s449 = smul.u32 4, %s23
      %p450 = scmp.lt.s32.totalorder %s449, 7
      %s451 = scalar_select %p450, %s449, 7
      %s452 = smul.addr %s451, 8
      %s453 = scalar_lea.vmem %s2, %s452
      %s454 = smul.u32 4, %s23
      %s455 = smul.u32 4, %s23
      %p456 = scmp.lt.s32.totalorder %s455, 7
      %s457 = scalar_select %p456, %s455, 7
      %s458 = smul.addr %s457, 4
      %s459 = scalar_lea.vmem %s12, %s458
      %s460 = smul.u32 4, %s23
      %v462 = vld [vmem:[%s441] sm:$0xff]
      %v463 = vld [vmem:[%s441 + $0x8] sm:$0xff]
      %v464 = vld [vmem:[%s441 + $0x10] sm:$0xff]
      %v465 = vld [vmem:[%s441 + $0x18] sm:$0xff]
      %v466 = vld [vmem:[%s447] sm:$0xff]
      %v467 = vld [vmem:[%s447 + $0x8] sm:$0xff]
      %v468 = vld [vmem:[%s447 + $0x10] sm:$0xff]
      %v469 = vld [vmem:[%s447 + $0x18] sm:$0xff]
      %vm470 = vcmp.ne.f32.partialorder %v462, %v462
      %vm471 = vcmp.ne.f32.partialorder %v463, %v463
      %vm472 = vcmp.ne.f32.partialorder %v464, %v464
      %vm473 = vcmp.ne.f32.partialorder %v465, %v465
      %v474 = vsel %vm470, 0.0, %v462
      %v475 = vsel %vm471, 0.0, %v463
      %v476 = vsel %vm472, 0.0, %v464
      %v477 = vsel %vm473, 0.0, %v465
      %v478 = vpack.c.bf16 %v475, %v474
      %v479 = vpack.c.bf16 %v477, %v476
      %vm480 = vcmp.ne.f32.partialorder %v466, %v466
      %vm481 = vcmp.ne.f32.partialorder %v467, %v467
      %vm482 = vcmp.ne.f32.partialorder %v468, %v468
      %vm483 = vcmp.ne.f32.partialorder %v469, %v469
      %v484 = vsel %vm480, 0.0, %v466
      %v485 = vsel %vm481, 0.0, %v467
      %v486 = vsel %vm482, 0.0, %v468
      %v487 = vsel %vm483, 0.0, %v469
      %v488 = vpack.c.bf16 %v485, %v484
      %v489 = vpack.c.bf16 %v487, %v486
      %v490 = vld [vmem:[%s3] sm:$0xff]
      %v491 = vld [vmem:[%s4] sm:$0xff]
      %v493 = vunpack.c.l.b16 %v491
      %v494 = vunpack.c.h.b16 %v491
      %v495 = vpack.c.b16 %v493, %v493
      %v496 = vpack.c.b16 %v494, %v494
      %vm497 = vcmask 64512
      %v499 = vsel %vm497, %v488, 0
      %v502 = vsel %vm497, %v489, 0
      %vm504 = vcmask 1043456
      %v506 = vsel %vm504, %v495, 0
      %v509 = vsel %vm504, %v496, 0
      %511 = vmatpush.bf16.msra.mxu0 0
      %512 = vmatpush.bf16.msra.mxu0 0
      %513 = vmatpush.bf16.msra.mxu0 0
      %514 = vmatpush.bf16.msra.mxu0 0
      %515 = vmatpush.bf16.msra.mxu0 0
      %516 = vmatpush.bf16.msra.mxu0 0
      %517 = vmatpush.bf16.msra.mxu0 0
      %518 = vmatpush.bf16.msra.mxu0 %v506
      %519 = vmatmul.bf16.gmra.mxu0 %v499
      %v520 = vpop.f32.mrf.mxu0
      %v521 = vadd.f32 0.0, %v520
      %v522 = vpop.f32.mrf.mxu0
      %v523 = vadd.f32 0.0, %v522
      %524 = vmatmul.bf16.gmra.mxu0 %v502
      %v525 = vpop.f32.mrf.mxu0
      %v526 = vadd.f32 0.0, %v525
      %v527 = vpop.f32.mrf.mxu0
      %v528 = vadd.f32 0.0, %v527
      %529 = vdwg.mxu0
      %530 = vmatpush.bf16.msra.mxu0 0
      %531 = vmatpush.bf16.msra.mxu0 0
      %532 = vmatpush.bf16.msra.mxu0 0
      %533 = vmatpush.bf16.msra.mxu0 0
      %534 = vmatpush.bf16.msra.mxu0 0
      %535 = vmatpush.bf16.msra.mxu0 0
      %536 = vmatpush.bf16.msra.mxu0 0
      %537 = vmatpush.bf16.msra.mxu0 %v509
      %538 = vmatmul.bf16.gmra.mxu0 %v499
      %v539 = vpop.f32.mrf.mxu0
      %v540 = vadd.f32 0.0, %v539
      %v541 = vpop.f32.mrf.mxu0
      %v542 = vadd.f32 0.0, %v541
      %543 = vmatmul.bf16.gmra.mxu0 %v502
      %v544 = vpop.f32.mrf.mxu0
      %v545 = vadd.f32 0.0, %v544
      %v546 = vpop.f32.mrf.mxu0
      %v547 = vadd.f32 0.0, %v546
      %548 = vdwg.mxu0
      %v550 = vunpack.c.l.b16 %v490
      %v551 = vunpack.c.h.b16 %v490
      %v552 = vpack.c.b16 %v550, %v550
      %v553 = vpack.c.b16 %v551, %v551
      %v555 = vsel %vm497, %v478, 0
      %v558 = vsel %vm497, %v479, 0
      %v561 = vsel %vm504, %v552, 0
      %v564 = vsel %vm504, %v553, 0
      %566 = vmatpush.bf16.msra.mxu0 0
      %567 = vmatpush.bf16.msra.mxu0 0
      %568 = vmatpush.bf16.msra.mxu0 0
      %569 = vmatpush.bf16.msra.mxu0 0
      %570 = vmatpush.bf16.msra.mxu0 0
      %571 = vmatpush.bf16.msra.mxu0 0
      %572 = vmatpush.bf16.msra.mxu0 0
      %573 = vmatpush.bf16.msra.mxu0 %v561
      %574 = vmatmul.bf16.gmra.mxu0 %v555
      %v575 = vpop.f32.mrf.mxu0
      %v576 = vadd.f32 %v521, %v575
      %v577 = vpop.f32.mrf.mxu0
      %v578 = vadd.f32 %v523, %v577
      %579 = vmatmul.bf16.gmra.mxu0 %v558
      %v580 = vpop.f32.mrf.mxu0
      %v581 = vadd.f32 %v526, %v580
      %v582 = vpop.f32.mrf.mxu0
      %v583 = vadd.f32 %v528, %v582
      %584 = vdwg.mxu0
      %585 = vmatpush.bf16.msra.mxu0 0
      %586 = vmatpush.bf16.msra.mxu0 0
      %587 = vmatpush.bf16.msra.mxu0 0
      %588 = vmatpush.bf16.msra.mxu0 0
      %589 = vmatpush.bf16.msra.mxu0 0
      %590 = vmatpush.bf16.msra.mxu0 0
      %591 = vmatpush.bf16.msra.mxu0 0
      %592 = vmatpush.bf16.msra.mxu0 %v564
      %593 = vmatmul.bf16.gmra.mxu0 %v555
      %v594 = vpop.f32.mrf.mxu0
      %v595 = vadd.f32 %v540, %v594
      %v596 = vpop.f32.mrf.mxu0
      %v597 = vadd.f32 %v542, %v596
      %598 = vmatmul.bf16.gmra.mxu0 %v558
      %v599 = vpop.f32.mrf.mxu0
      %v600 = vadd.f32 %v545, %v599
      %v601 = vpop.f32.mrf.mxu0
      %v602 = vadd.f32 %v547, %v601
      %603 = vdwg.mxu0
      %v604 = vld [vmem:[%s11] ss:$8 sm:$0x3]
      %v606 = vperm.slane %v604, 0
      %v607 = vperm.slane %v604, 1
      %v610 = vadd.f32 %v576, %v606
      %v611 = vadd.f32 %v595, %v607
      %v612 = vadd.f32 %v578, %v606
      %v613 = vadd.f32 %v597, %v607
      %v614 = vadd.f32 %v581, %v606
      %v615 = vadd.f32 %v600, %v607
      %v616 = vadd.f32 %v583, %v606
      %v617 = vadd.f32 %v602, %v607
      %v618 = vmax.f32 %v610, 0.0
      %v619 = vmax.f32 %v611, 0.0
      %v620 = vmax.f32 %v612, 0.0
      %v621 = vmax.f32 %v613, 0.0
      %v622 = vmax.f32 %v614, 0.0
      %v623 = vmax.f32 %v615, 0.0
      %v624 = vmax.f32 %v616, 0.0
      %v625 = vmax.f32 %v617, 0.0
      %v626 = vpack.c.bf16 %v620, %v618
      %v627 = vpack.c.bf16 %v621, %v619
      %v628 = vpack.c.bf16 %v624, %v622
      %v629 = vpack.c.bf16 %v625, %v623
      %v630 = vld [vmem:[%s5] sm:$0xf]
      %v631 = vld [vmem:[%s5 + $0x4] sm:$0xf]
      %v632 = vld [vmem:[%s5 + $0x8] sm:$0xf]
      %v633 = vld [vmem:[%s5 + $0xc] sm:$0xf]
      %v634 = vld [vmem:[%s5 + $0x10] sm:$0xf]
      %v635 = vld [vmem:[%s5 + $0x14] sm:$0xf]
      %v636 = vld [vmem:[%s5 + $0x18] sm:$0xf]
      %v637 = vld [vmem:[%s5 + $0x1c] sm:$0xf]
      %v638 = vld [vmem:[%s5 + $0x20] sm:$0xf]
      %v639 = vld [vmem:[%s5 + $0x24] sm:$0xf]
      %v640 = vld [vmem:[%s5 + $0x28] sm:$0xf]
      %v641 = vld [vmem:[%s5 + $0x2c] sm:$0xf]
      %v642 = vld [vmem:[%s5 + $0x30] sm:$0xf]
      %v643 = vld [vmem:[%s5 + $0x34] sm:$0xf]
      %v644 = vld [vmem:[%s5 + $0x38] sm:$0xf]
      %v645 = vld [vmem:[%s5 + $0x3c] sm:$0xf]
      %v646 = vld [vmem:[%s5 + $0x40] sm:$0xf]
      %v647 = vld [vmem:[%s5 + $0x44] sm:$0xf]
      %v648 = vld [vmem:[%s5 + $0x48] sm:$0xf]
      %v649 = vld [vmem:[%s5 + $0x4c] sm:$0xf]
      %v650 = vld [vmem:[%s5 + $0x50] sm:$0xf]
      %v651 = vld [vmem:[%s5 + $0x54] sm:$0xf]
      %v652 = vld [vmem:[%s5 + $0x58] sm:$0xf]
      %v653 = vld [vmem:[%s5 + $0x5c] sm:$0xf]
      %v654 = vld [vmem:[%s5 + $0x60] sm:$0xf]
      %v655 = vld [vmem:[%s5 + $0x64] sm:$0xf]
      %v656 = vld [vmem:[%s5 + $0x68] sm:$0xf]
      %v657 = vld [vmem:[%s5 + $0x6c] sm:$0xf]
      %v658 = vld [vmem:[%s5 + $0x70] sm:$0xf]
      %v659 = vld [vmem:[%s5 + $0x74] sm:$0xf]
      %v660 = vld [vmem:[%s5 + $0x78] sm:$0xf]
      %v661 = vld [vmem:[%s5 + $0x7c] sm:$0xf]
      %v662 = vld [vmem:[%s11 + $0x1] ss:$0 sm:$0xff]
      %v695 = vunpack.c.l.b16 %v630
      %v696 = vunpack.c.l.b16 %v631
      %v697 = vunpack.c.l.b16 %v632
      %v698 = vunpack.c.l.b16 %v633
      %v699 = vunpack.c.l.b16 %v634
      %v700 = vunpack.c.l.b16 %v635
      %v701 = vunpack.c.l.b16 %v636
      %v702 = vunpack.c.l.b16 %v637
      %v703 = vunpack.c.l.b16 %v638
      %v704 = vunpack.c.l.b16 %v639
      %v705 = vunpack.c.l.b16 %v640
      %v706 = vunpack.c.l.b16 %v641
      %v707 = vunpack.c.l.b16 %v642
      %v708 = vunpack.c.l.b16 %v643
      %v709 = vunpack.c.l.b16 %v644
      %v710 = vunpack.c.l.b16 %v645
      %v711 = vunpack.c.l.b16 %v646
      %v712 = vunpack.c.l.b16 %v647
      %v713 = vunpack.c.l.b16 %v648
      %v714 = vunpack.c.l.b16 %v649
      %v715 = vunpack.c.l.b16 %v650
      %v716 = vunpack.c.l.b16 %v651
      %v717 = vunpack.c.l.b16 %v652
      %v718 = vunpack.c.l.b16 %v653
      %v719 = vunpack.c.l.b16 %v654
      %v720 = vunpack.c.l.b16 %v655
      %v721 = vunpack.c.l.b16 %v656
      %v722 = vunpack.c.l.b16 %v657
      %v723 = vunpack.c.l.b16 %v658
      %v724 = vunpack.c.l.b16 %v659
      %v725 = vunpack.c.l.b16 %v660
      %v726 = vunpack.c.l.b16 %v661
      %v727 = vpack.c.b16 %v696, %v695
      %v728 = vpack.c.b16 %v698, %v697
      %v729 = vpack.c.b16 %v700, %v699
      %v730 = vpack.c.b16 %v702, %v701
      %v731 = vpack.c.b16 %v704, %v703
      %v732 = vpack.c.b16 %v706, %v705
      %v733 = vpack.c.b16 %v708, %v707
      %v734 = vpack.c.b16 %v710, %v709
      %v735 = vpack.c.b16 %v712, %v711
      %v736 = vpack.c.b16 %v714, %v713
      %v737 = vpack.c.b16 %v716, %v715
      %v738 = vpack.c.b16 %v718, %v717
      %v739 = vpack.c.b16 %v720, %v719
      %v740 = vpack.c.b16 %v722, %v721
      %v741 = vpack.c.b16 %v724, %v723
      %v742 = vpack.c.b16 %v726, %v725
      %759 = vmatpush.bf16.msra.mxu0 %v734
      %760 = vmatpush.bf16.msra.mxu0 %v733
      %761 = vmatpush.bf16.msra.mxu0 %v732
      %762 = vmatpush.bf16.msra.mxu0 %v731
      %763 = vmatpush.bf16.msra.mxu0 %v730
      %764 = vmatpush.bf16.msra.mxu0 %v729
      %765 = vmatpush.bf16.msra.mxu0 %v728
      %766 = vmatpush.bf16.msra.mxu0 %v727
      %767 = vmatmul.bf16.gmra.mxu0 %v626
      %v768 = vpop.f32.mrf.mxu0
      %v769 = vadd.f32 %v662, %v768
      %v770 = vpop.f32.mrf.mxu0
      %v771 = vadd.f32 %v662, %v770
      %772 = vmatmul.bf16.gmra.mxu0 %v628
      %v773 = vpop.f32.mrf.mxu0
      %v774 = vadd.f32 %v662, %v773
      %v775 = vpop.f32.mrf.mxu0
      %v776 = vadd.f32 %v662, %v775
      %777 = vdwg.mxu0
      %778 = vmatpush.bf16.msra.mxu0 %v742
      %779 = vmatpush.bf16.msra.mxu0 %v741
      %780 = vmatpush.bf16.msra.mxu0 %v740
      %781 = vmatpush.bf16.msra.mxu0 %v739
      %782 = vmatpush.bf16.msra.mxu0 %v738
      %783 = vmatpush.bf16.msra.mxu0 %v737
      %784 = vmatpush.bf16.msra.mxu0 %v736
      %785 = vmatpush.bf16.msra.mxu0 %v735
      %786 = vmatmul.bf16.gmra.mxu0 %v627
      %v787 = vpop.f32.mrf.mxu0
      %v788 = vadd.f32 %v769, %v787
      %v789 = vpop.f32.mrf.mxu0
      %v790 = vadd.f32 %v771, %v789
      %791 = vmatmul.bf16.gmra.mxu0 %v629
      %v792 = vpop.f32.mrf.mxu0
      %v793 = vadd.f32 %v774, %v792
      %v794 = vpop.f32.mrf.mxu0
      %v795 = vadd.f32 %v776, %v794
      %796 = vdwg.mxu0
      %v797 = vmax.f32 %v788, 0.0
      %v798 = vmax.f32 %v790, 0.0
      %v799 = vmax.f32 %v793, 0.0
      %v800 = vmax.f32 %v795, 0.0
      %vm801 = vmxor %vm470, 1
      %vm802 = vmxor %vm471, 1
      %vm803 = vmxor %vm472, 1
      %vm804 = vmxor %vm473, 1
      %v805 = vsel %vm801, 1, 0
      %v806 = vsel %vm802, 1, 0
      %v807 = vsel %vm803, 1, 0
      %v808 = vsel %vm804, 1, 0
      %v809 = vcvt.s32.f32 %v805
      %v810 = vcvt.s32.f32 %v806
      %v811 = vcvt.s32.f32 %v807
      %v812 = vcvt.s32.f32 %v808
      %v813 = vpack.c.bf16 %v810, %v809
      %v814 = vpack.c.bf16 %v812, %v811
      %v815 = vld [vmem:[%s6] sm:$0xf]
      %v817 = vsel %vm497, %v813, 0
      %v820 = vsel %vm497, %v814, 0
      %v823 = vsel %vm504, %v815, 0
      %825 = vmatpush.bf16.msra.mxu0 0
      %826 = vmatpush.bf16.msra.mxu0 0
      %827 = vmatpush.bf16.msra.mxu0 0
      %828 = vmatpush.bf16.msra.mxu0 0
      %829 = vmatpush.bf16.msra.mxu0 0
      %830 = vmatpush.bf16.msra.mxu0 0
      %831 = vmatpush.bf16.msra.mxu0 0
      %832 = vmatpush.bf16.msra.mxu0 %v823
      %833 = vmatmul.bf16.gmra.mxu0 %v817
      %v834 = vpop.f32.mrf.mxu0
      %v835 = vadd.f32 0.0, %v834
      %v836 = vpop.f32.mrf.mxu0
      %v837 = vadd.f32 0.0, %v836
      %838 = vmatmul.bf16.gmra.mxu0 %v820
      %v839 = vpop.f32.mrf.mxu0
      %v840 = vadd.f32 0.0, %v839
      %v841 = vpop.f32.mrf.mxu0
      %v842 = vadd.f32 0.0, %v841
      %843 = vdwg.mxu0
      %v844 = vmul.f32 %v797, %v835
      %v845 = vmul.f32 %v798, %v837
      %v846 = vmul.f32 %v799, %v840
      %v847 = vmul.f32 %v800, %v842
      %v848 = vpack.c.bf16 %v845, %v844
      %v849 = vpack.c.bf16 %v847, %v846
      %v850 = vld [vmem:[%s7] sm:$0xf]
      %v851 = vld [vmem:[%s7 + $0x4] sm:$0xf]
      %v852 = vld [vmem:[%s7 + $0x8] sm:$0xf]
      %v853 = vld [vmem:[%s7 + $0xc] sm:$0xf]
      %v854 = vld [vmem:[%s7 + $0x10] sm:$0xf]
      %v855 = vld [vmem:[%s7 + $0x14] sm:$0xf]
      %v856 = vld [vmem:[%s7 + $0x18] sm:$0xf]
      %v857 = vld [vmem:[%s7 + $0x1c] sm:$0xf]
      %v858 = vld [vmem:[%s7 + $0x20] sm:$0xf]
      %v859 = vld [vmem:[%s7 + $0x24] sm:$0xf]
      %v860 = vld [vmem:[%s7 + $0x28] sm:$0xf]
      %v861 = vld [vmem:[%s7 + $0x2c] sm:$0xf]
      %v862 = vld [vmem:[%s7 + $0x30] sm:$0xf]
      %v863 = vld [vmem:[%s7 + $0x34] sm:$0xf]
      %v864 = vld [vmem:[%s7 + $0x38] sm:$0xf]
      %v865 = vld [vmem:[%s7 + $0x3c] sm:$0xf]
      %v882 = vunpack.c.l.b16 %v850
      %v883 = vunpack.c.l.b16 %v851
      %v884 = vunpack.c.l.b16 %v852
      %v885 = vunpack.c.l.b16 %v853
      %v886 = vunpack.c.l.b16 %v854
      %v887 = vunpack.c.l.b16 %v855
      %v888 = vunpack.c.l.b16 %v856
      %v889 = vunpack.c.l.b16 %v857
      %v890 = vunpack.c.l.b16 %v858
      %v891 = vunpack.c.l.b16 %v859
      %v892 = vunpack.c.l.b16 %v860
      %v893 = vunpack.c.l.b16 %v861
      %v894 = vunpack.c.l.b16 %v862
      %v895 = vunpack.c.l.b16 %v863
      %v896 = vunpack.c.l.b16 %v864
      %v897 = vunpack.c.l.b16 %v865
      %v898 = vpack.c.b16 %v883, %v882
      %v899 = vpack.c.b16 %v885, %v884
      %v900 = vpack.c.b16 %v887, %v886
      %v901 = vpack.c.b16 %v889, %v888
      %v902 = vpack.c.b16 %v891, %v890
      %v903 = vpack.c.b16 %v893, %v892
      %v904 = vpack.c.b16 %v895, %v894
      %v905 = vpack.c.b16 %v897, %v896
      %914 = vmatpush.bf16.msra.mxu0 %v905
      %915 = vmatpush.bf16.msra.mxu0 %v904
      %916 = vmatpush.bf16.msra.mxu0 %v903
      %917 = vmatpush.bf16.msra.mxu0 %v902
      %918 = vmatpush.bf16.msra.mxu0 %v901
      %919 = vmatpush.bf16.msra.mxu0 %v900
      %920 = vmatpush.bf16.msra.mxu0 %v899
      %921 = vmatpush.bf16.msra.mxu0 %v898
      %922 = vmatmul.bf16.gmra.mxu0 %v848
      %v923 = vpop.f32.mrf.mxu0
      %v924 = vadd.f32 0.0, %v923
      %v925 = vpop.f32.mrf.mxu0
      %v926 = vadd.f32 0.0, %v925
      %927 = vmatmul.bf16.gmra.mxu0 %v849
      %v928 = vpop.f32.mrf.mxu0
      %v929 = vadd.f32 0.0, %v928
      %v930 = vpop.f32.mrf.mxu0
      %v931 = vadd.f32 0.0, %v930
      %932 = vdwg.mxu0
      %v933 = vpack.c.bf16 %v926, %v924
      %v934 = vpack.c.bf16 %v931, %v929
      %v935 = vld [vmem:[%s8] sm:$0xf]
      %v936 = vld [vmem:[%s8 + $0x4] sm:$0xf]
      %v937 = vld [vmem:[%s11 + $0x2] ss:$0 sm:$0xff]
      %v940 = vunpack.c.l.b16 %v935
      %v941 = vunpack.c.l.b16 %v936
      %v942 = vpack.c.b16 %v941, %v940
      %vm944 = vcmask 130048
      %v946 = vsel %vm944, %v933, 0
      %v949 = vsel %vm944, %v934, 0
      %951 = vmatpush.bf16.msra.mxu0 0
      %952 = vmatpush.bf16.msra.mxu0 0
      %953 = vmatpush.bf16.msra.mxu0 0
      %954 = vmatpush.bf16.msra.mxu0 0
      %955 = vmatpush.bf16.msra.mxu0 0
      %956 = vmatpush.bf16.msra.mxu0 0
      %957 = vmatpush.bf16.msra.mxu0 0
      %958 = vmatpush.bf16.msra.mxu0 %v942
      %959 = vmatmul.bf16.gmra.mxu0 %v946
      %v960 = vpop.f32.mrf.mxu0
      %v961 = vadd.f32 %v937, %v960
      %v962 = vpop.f32.mrf.mxu0
      %v963 = vadd.f32 %v937, %v962
      %964 = vmatmul.bf16.gmra.mxu0 %v949
      %v965 = vpop.f32.mrf.mxu0
      %v966 = vadd.f32 %v937, %v965
      %v967 = vpop.f32.mrf.mxu0
      %v968 = vadd.f32 %v937, %v967
      %969 = vdwg.mxu0
      %v970 = vmax.f32 %v961, 0.0
      %v971 = vmax.f32 %v963, 0.0
      %v972 = vmax.f32 %v966, 0.0
      %v973 = vmax.f32 %v968, 0.0
      %v974 = vpack.c.bf16 %v971, %v970
      %v975 = vpack.c.bf16 %v973, %v972
      %v976 = vld [vmem:[%s9] sm:$0xf]
      %v977 = vld [vmem:[%s9 + $0x4] sm:$0xf]
      %v978 = vld [vmem:[%s9 + $0x8] sm:$0xf]
      %v979 = vld [vmem:[%s9 + $0xc] sm:$0xf]
      %v980 = vld [vmem:[%s11 + $0x4] ss:$0 sm:$0xff]
      %v985 = vunpack.c.l.b16 %v976
      %v986 = vunpack.c.l.b16 %v977
      %v987 = vunpack.c.l.b16 %v978
      %v988 = vunpack.c.l.b16 %v979
      %v989 = vpack.c.b16 %v986, %v985
      %v990 = vpack.c.b16 %v988, %v987
      %vm993 = vcmask 261120
      %v995 = vsel %vm993, %v974, 0
      %v998 = vsel %vm993, %v975, 0
      %1000 = vmatpush.bf16.msra.mxu0 0
      %1001 = vmatpush.bf16.msra.mxu0 0
      %1002 = vmatpush.bf16.msra.mxu0 0
      %1003 = vmatpush.bf16.msra.mxu0 0
      %1004 = vmatpush.bf16.msra.mxu0 0
      %1005 = vmatpush.bf16.msra.mxu0 0
      %1006 = vmatpush.bf16.msra.mxu0 %v990
      %1007 = vmatpush.bf16.msra.mxu0 %v989
      %1008 = vmatmul.bf16.gmra.mxu0 %v995
      %v1009 = vpop.f32.mrf.mxu0
      %v1010 = vadd.f32 %v980, %v1009
      %v1011 = vpop.f32.mrf.mxu0
      %v1012 = vadd.f32 %v980, %v1011
      %1013 = vmatmul.bf16.gmra.mxu0 %v998
      %v1014 = vpop.f32.mrf.mxu0
      %v1015 = vadd.f32 %v980, %v1014
      %v1016 = vpop.f32.mrf.mxu0
      %v1017 = vadd.f32 %v980, %v1016
      %1018 = vdwg.mxu0
      %v1019 = vmax.f32 %v1010, 0.0
      %v1020 = vmax.f32 %v1012, 0.0
      %v1021 = vmax.f32 %v1015, 0.0
      %v1022 = vmax.f32 %v1017, 0.0
      %v1023 = vld [vmem:[%s453] sm:$0xff]
      %v1024 = vld [vmem:[%s453 + $0x8] sm:$0xff]
      %v1025 = vld [vmem:[%s453 + $0x10] sm:$0xff]
      %v1026 = vld [vmem:[%s453 + $0x18] sm:$0xff]
      %v1027 = vpack.c.bf16 %v1024, %v1023
      %v1028 = vpack.c.bf16 %v1026, %v1025
      %v1029 = vld [vmem:[%s10] sm:$0xf]
      %v1030 = vld [vmem:[%s10 + $0x4] sm:$0xf]
      %v1031 = vld [vmem:[%s10 + $0x8] sm:$0xf]
      %v1032 = vld [vmem:[%s10 + $0xc] sm:$0xf]
      %v1033 = vld [vmem:[%s11 + $0x3] ss:$0 sm:$0xff]
      %v1038 = vunpack.c.l.b16 %v1029
      %v1039 = vunpack.c.l.b16 %v1030
      %v1040 = vunpack.c.l.b16 %v1031
      %v1041 = vunpack.c.l.b16 %v1032
      %v1042 = vpack.c.b16 %v1039, %v1038
      %v1043 = vpack.c.b16 %v1041, %v1040
      %v1047 = vsel %vm993, %v1027, 0
      %v1050 = vsel %vm993, %v1028, 0
      %1052 = vmatpush.bf16.msra.mxu0 0
      %1053 = vmatpush.bf16.msra.mxu0 0
      %1054 = vmatpush.bf16.msra.mxu0 0
      %1055 = vmatpush.bf16.msra.mxu0 0
      %1056 = vmatpush.bf16.msra.mxu0 0
      %1057 = vmatpush.bf16.msra.mxu0 0
      %1058 = vmatpush.bf16.msra.mxu0 %v1043
      %1059 = vmatpush.bf16.msra.mxu0 %v1042
      %1060 = vmatmul.bf16.gmra.mxu0 %v1047
      %v1061 = vpop.f32.mrf.mxu0
      %v1062 = vadd.f32 %v1033, %v1061
      %v1063 = vpop.f32.mrf.mxu0
      %v1064 = vadd.f32 %v1033, %v1063
      %1065 = vmatmul.bf16.gmra.mxu0 %v1050
      %v1066 = vpop.f32.mrf.mxu0
      %v1067 = vadd.f32 %v1033, %v1066
      %v1068 = vpop.f32.mrf.mxu0
      %v1069 = vadd.f32 %v1033, %v1068
      %1070 = vdwg.mxu0
      %v1071 = vadd.f32 %v1062, %v1019
      %v1072 = vadd.f32 %v1064, %v1020
      %v1073 = vadd.f32 %v1067, %v1021
      %v1074 = vadd.f32 %v1069, %v1022
      %v1075 = vpack.c.bf16 %v1071, %v1071
      %v1076 = vpack.c.bf16 %v1072, %v1072
      %v1077 = vpack.c.bf16 %v1073, %v1073
      %v1078 = vpack.c.bf16 %v1074, %v1074
      %vm1079 = vcmask 388096
      %1080 = vst.msk [vmem:[%s459] sm:$0xf] %vm1079, %v1075
      %1081 = vst.msk [vmem:[%s459 + $0x4] sm:$0xf] %vm1079, %v1076
      %1082 = vst.msk [vmem:[%s459 + $0x8] sm:$0xf] %vm1079, %v1077
      %1083 = vst.msk [vmem:[%s459 + $0xc] sm:$0xf] %vm1079, %v1078
      %s1084 = smul.u32 4, %s23
      %p1085 = scmp.lt.s32.totalorder %s1084, 7
      %s1086 = scalar_select %p1085, %s1084, 7
      %s1087 = smul.addr %s1086, 4
      %s1088 = scalar_lea.vmem %s12, %s1087
      // Predicated region
      $region69: #{lappe_forward.1} parent=67 // pred_check
        %p1089 = pneg %p308
      $region70: #{lappe_forward.1} parent=67 // pred_check_branch
        %1091 = sbr.rel (%p1089) target = $region72
      $region71: #{lappe_forward.1} parent=67 // pred_region
        %s1092 = smul.u32 4, %s23
      $region72: #{lappe_forward.1} parent=67 // pred_fallthru
        _
    $region68: #{lappe_forward.1} parent=5 // pred_fallthru
      _
    %p1093 = scmp.le.s32.totalorder 2, %s18
    // Predicated region
    $region73: #{lappe_forward.1} parent=5 // pred_check
      %p1094 = pneg %p1093
    $region74: #{lappe_forward.1} parent=5 // pred_check_branch
      %1096 = sbr.rel (%p1094) target = $region76
    $region75: #{lappe_forward.1} parent=5 // pred_region
      %s1097 = ssub.s32 %s18, 2
      // Predicated region
      $region77: #{lappe_forward.1} parent=75 // pred_check
        %p1098 = pneg %p314
      $region78: #{lappe_forward.1} parent=75 // pred_check_branch
        %1100 = sbr.rel (%p1098) target = $region80
      $region79: #{lappe_forward.1} parent=75 // pred_region
        %s1101 = smul.u32 4, %s24
        %p1102 = scmp.lt.s32.totalorder %s1101, 7
        %s1103 = scalar_select %p1102, %s1101, 7
        %s1104 = smul.addr %s1103, 4
        %s1105 = scalar_lea.vmem %s12, %s1104
      $region80: #{lappe_forward.1} parent=75 // pred_fallthru
        _
    $region76: #{lappe_forward.1} parent=5 // pred_fallthru
      _
  $region6: #{lappe_forward.1} parent=0 // loop_footer
    %s22 = sadd.s32 1, %s18
  $region7: #{lappe_forward.1} parent=0 // loop_footer_branch
    %17 = sbr.rel target = $region3
  $region8: #{lappe_forward.1} parent=0 // loop_exit
    _

</llo_original>
